<compile_context>
chip_gen: v7x
topology: tpu7x:2x2x1
jax: 0.10.0
libtpu: 0.0.40
codegen_flags: <defaults>
</compile_context>

<pallas_src>
import functools

import jax
import jax.numpy as jnp
from jax.experimental import pallas as pl
from jax.experimental.pallas import tpu as pltpu

HIDDEN = 32                  # hidden_dim of the module
PACK = 4                     # tokens packed per 128-lane vreg row
LANES = PACK * HIDDEN        # 128
LAYER_NORM_EPS = 1e-12
LN_CHUNK = 512               # rows per in-tile LayerNorm sub-block (bounds f32 temps)
# TODO(synk): dropout is implemented as identity (inference / eval mode); training-time
# stochastic dropout would need pltpu.prng_seed + pltpu.prng_random_bits masking.


def attention_output_kernel(x_ref, r_ref, w_ref, ones_ref, b_ref, g_ref, be_ref, o_ref,
                            *, ln_chunk):
    # x_ref/r_ref/o_ref: (tile_r, 128)  lane-dense, 4 tokens per row
    # w_ref:    (128, 128) kron(I4, W.T)          (stream dtype -> single-pass MXU if bf16)
    # ones_ref: (128, 128) kron(I4, ones(32,32))  (f32) -> per-token 32-lane-group sums
    # b/g/be:   (1, 128)   dense bias / LN gamma / LN beta, tiled 4x (f32)
    w_blk = w_ref[...]
    ones_blk = ones_ref[...]
    bias = b_ref[...]
    gamma = g_ref[...]
    beta = be_ref[...]
    inv_h = jnp.float32(1.0 / HIDDEN)

    def do_rows(r0, rows):
        x = x_ref[pl.ds(r0, rows), :]                              # native dtype -> MXU
        res = r_ref[pl.ds(r0, rows), :].astype(jnp.float32)
        h = jnp.dot(x, w_blk, preferred_element_type=jnp.float32) + bias + res
        # Per-token reductions via block-ones matmuls on the otherwise idle MXU.
        # The two dots are independent so they pipeline without an MXU drain in between.
        s1 = jnp.dot(h, ones_blk, preferred_element_type=jnp.float32)
        s2 = jnp.dot(h * h, ones_blk, preferred_element_type=jnp.float32)
        mean = s1 * inv_h
        # var = E[h^2] - mean^2 (clamped against tiny negative rounding residue).
        var = jnp.maximum(s2 * inv_h - mean * mean, 0.0)
        inv_std = jax.lax.rsqrt(var + LAYER_NORM_EPS)
        o_ref[pl.ds(r0, rows), :] = ((h - mean) * inv_std * gamma + beta).astype(o_ref.dtype)

    tile_rows = x_ref.shape[0]
    n_full = tile_rows // ln_chunk
    rem = tile_rows % ln_chunk
    align = ln_chunk & -ln_chunk                 # largest power-of-two divisor of the stride

    if n_full:
        def body(c, carry):
            do_rows(pl.multiple_of(c * ln_chunk, align), ln_chunk)
            return carry
        jax.lax.fori_loop(0, n_full, body, 0, unroll=min(n_full, 8))
    if rem:
        do_rows(n_full * ln_chunk, rem)          # static tail chunk (sublane-aligned start)


def attention_output(outputs, inputs, w, b, gamma, beta, *, tile_r=None, ln_chunk=LN_CHUNK):
    """Fused dense + dropout(eval) + residual-add + LayerNorm.

    outputs/inputs: (B, S, H); w: (H, H) PyTorch Linear weight (out, in); b/gamma/beta: (H,).
    """
    B, S, H = outputs.shape
    assert H == HIDDEN
    N = B * S
    dtype = outputs.dtype
    itemsize = jnp.dtype(dtype).itemsize
    mult = 8 if itemsize >= 4 else (16 if itemsize == 2 else 32)   # sublane packing multiple
    if tile_r is None:
        # ~24 MiB of double-buffered I/O per step; LN temps are chunk-bounded in-kernel.
        tile_r = 8192 if itemsize >= 4 else 16384

    # Minimal pad: only to a multiple of PACK tokens (<= 3 rows, only when N % 4 != 0).
    pad_tokens = (-N) % PACK
    N_pack = N + pad_tokens
    R = N_pack // PACK

    def pack(a):
        a2 = a.reshape(N, H)
        if pad_tokens:
            a2 = jnp.pad(a2, ((0, pad_tokens), (0, 0)))
        return a2.reshape(R, LANES)              # row-major reinterpret, lane-dense

    x2 = pack(outputs)
    r2 = pack(inputs)

    # Tile sizing: shrink for small inputs and keep >= 2 grid steps when possible so
    # dimension_semantics=("parallel",) uses both TensorCores on v7x. Ragged last blocks
    # are handled by Pallas (masked edge block); its garbage rows are never written back.
    half_r = pl.cdiv(pl.cdiv(R, 2), mult) * mult
    tile_r = min(tile_r, half_r)
    if tile_r >= R:                              # single block must not exceed the array
        tile_r = R                               # (block == full array dim is allowed)
    grid = (pl.cdiv(R, tile_r),)

    # Resident (128, 128) operands (64 KiB each).
    w_blk = jnp.kron(jnp.eye(PACK, dtype=w.dtype), w.T).astype(dtype)     # block-diag W.T
    ones_blk = jnp.kron(jnp.eye(PACK, dtype=jnp.float32),
                        jnp.ones((HIDDEN, HIDDEN), dtype=jnp.float32))    # block ones
    b_t = jnp.tile(b.astype(jnp.float32), PACK).reshape(1, LANES)
    g_t = jnp.tile(gamma.astype(jnp.float32), PACK).reshape(1, LANES)
    be_t = jnp.tile(beta.astype(jnp.float32), PACK).reshape(1, LANES)

    kernel = functools.partial(attention_output_kernel, ln_chunk=min(ln_chunk, tile_r))

    out2 = pl.pallas_call(
        kernel,
        out_shape=jax.ShapeDtypeStruct((R, LANES), dtype),
        grid_spec=pltpu.PrefetchScalarGridSpec(
            num_scalar_prefetch=0,
            grid=grid,
            in_specs=[
                pl.BlockSpec((tile_r, LANES), lambda i: (i, 0)),   # packed attention outputs
                pl.BlockSpec((tile_r, LANES), lambda i: (i, 0)),   # packed residual
                pl.BlockSpec((LANES, LANES), lambda i: (0, 0)),    # block-diag weight (resident)
                pl.BlockSpec((LANES, LANES), lambda i: (0, 0)),    # block ones (resident)
                pl.BlockSpec((1, LANES), lambda i: (0, 0)),        # bias
                pl.BlockSpec((1, LANES), lambda i: (0, 0)),        # ln gamma
                pl.BlockSpec((1, LANES), lambda i: (0, 0)),        # ln beta
            ],
            out_specs=pl.BlockSpec((tile_r, LANES), lambda i: (i, 0)),
        ),
        compiler_params=pltpu.CompilerParams(
            dimension_semantics=("parallel",),              # shards grid across v7x's 2 TCs
            vmem_limit_bytes=48 * 1024 * 1024,              # fits v5e/v6e and v7x's 64 MiB/TC
        ),
    )(x2, r2, w_blk, ones_blk, b_t, g_t, be_t)

    out = out2.reshape(N_pack, H)
    if pad_tokens:
        out = out[:N]                             # <= 3 rows of padding, cheap slice
    return out.reshape(B, S, H)


def reference(outputs, inputs, w, b, gamma, beta):
    h = jnp.einsum("bsh,oh->bso", outputs, w) + b
    h = h + inputs
    mean = jnp.mean(h, axis=-1, keepdims=True)
    var = jnp.mean((h - mean) ** 2, axis=-1, keepdims=True)
    return (h - mean) * jax.lax.rsqrt(var + LAYER_NORM_EPS) * gamma + beta


if __name__ == "__main__":
    key = jax.random.PRNGKey(0)
    k1, k2, k3, k4, k5, k6 = jax.random.split(key, 6)

    B, S, H = 2, 8, HIDDEN
    outputs = jax.random.normal(k1, (B, S, H), dtype=jnp.float32)
    inputs = jax.random.normal(k2, (B, S, H), dtype=jnp.float32)

    # Deterministic parameter init (nn.Linear-like uniform, LayerNorm gamma=1 beta=0)
    bound = 1.0 / (H ** 0.5)
    w = jax.random.uniform(k3, (H, H), minval=-bound, maxval=bound, dtype=jnp.float32)
    b = jax.random.uniform(k4, (H,), minval=-bound, maxval=bound, dtype=jnp.float32)
    gamma = jnp.ones((H,), dtype=jnp.float32)
    beta = jnp.zeros((H,), dtype=jnp.float32)

    out = attention_output(outputs, inputs, w, b, gamma, beta)
    out = jax.block_until_ready(out)
    ref = reference(outputs, inputs, w, b, gamma, beta)
    assert jnp.allclose(out, ref, atol=1e-5, rtol=1e-5), "mismatch vs reference (small)"

    # Second shape exercising the ragged paths: N % 4 != 0 and a partial last grid block.
    B2, S2 = 3, 347                               # N = 1041 tokens
    outputs2 = jax.random.normal(k5, (B2, S2, H), dtype=jnp.float32)
    inputs2 = jax.random.normal(k6, (B2, S2, H), dtype=jnp.float32)
    out_r = jax.block_until_ready(attention_output(outputs2, inputs2, w, b, gamma, beta))
    ref_r = reference(outputs2, inputs2, w, b, gamma, beta)
    assert jnp.allclose(out_r, ref_r, atol=1e-5, rtol=1e-5), "mismatch vs reference (ragged)"

    print("KERNEL_OK")
</pallas_src>

<mosaic_0001>
module attributes {stable_mosaic.version = 11 : i64} {
  func.func @attention_output_kernel(%arg0: i32, %arg1: memref<4x128xf32, #tpu.memory_space<vmem>>, %arg2: memref<4x128xf32, #tpu.memory_space<vmem>>, %arg3: memref<128x128xf32, #tpu.memory_space<vmem>>, %arg4: memref<128x128xf32, #tpu.memory_space<vmem>>, %arg5: memref<1x128xf32, #tpu.memory_space<vmem>>, %arg6: memref<1x128xf32, #tpu.memory_space<vmem>>, %arg7: memref<1x128xf32, #tpu.memory_space<vmem>>, %arg8: memref<4x128xf32, #tpu.memory_space<vmem>>) attributes {dimension_semantics = [#tpu.dimension_semantics<parallel>], iteration_bounds = array<i64: 1>, scalar_prefetch = 0 : i64, scratch_operands = 0 : i64, tpu.core_type = #tpu.core_type<tc>, window_params = [{transform_indices = @transform_0, window_bounds = array<i64: 4, 128>}, {transform_indices = @transform_1, window_bounds = array<i64: 4, 128>}, {pipeline_mode = #tpu.pipeline_mode<synchronous>, transform_indices = @transform_2, window_bounds = array<i64: 128, 128>}, {pipeline_mode = #tpu.pipeline_mode<synchronous>, transform_indices = @transform_3, window_bounds = array<i64: 128, 128>}, {pipeline_mode = #tpu.pipeline_mode<synchronous>, transform_indices = @transform_4, window_bounds = array<i64: 1, 128>}, {pipeline_mode = #tpu.pipeline_mode<synchronous>, transform_indices = @transform_5, window_bounds = array<i64: 1, 128>}, {pipeline_mode = #tpu.pipeline_mode<synchronous>, transform_indices = @transform_6, window_bounds = array<i64: 1, 128>}, {transform_indices = @transform_7, window_bounds = array<i64: 4, 128>}]} {
    %c0 = arith.constant 0 : index
    %c0_0 = arith.constant 0 : index
    %0 = vector.load %arg3[%c0, %c0_0] : memref<128x128xf32, #tpu.memory_space<vmem>>, vector<128x128xf32>
    %c0_1 = arith.constant 0 : index
    %c0_2 = arith.constant 0 : index
    %1 = vector.load %arg4[%c0_1, %c0_2] : memref<128x128xf32, #tpu.memory_space<vmem>>, vector<128x128xf32>
    %c0_3 = arith.constant 0 : index
    %c0_4 = arith.constant 0 : index
    %2 = vector.load %arg5[%c0_3, %c0_4] : memref<1x128xf32, #tpu.memory_space<vmem>>, vector<1x128xf32>
    %c0_5 = arith.constant 0 : index
    %c0_6 = arith.constant 0 : index
    %3 = vector.load %arg6[%c0_5, %c0_6] : memref<1x128xf32, #tpu.memory_space<vmem>>, vector<1x128xf32>
    %c0_7 = arith.constant 0 : index
    %c0_8 = arith.constant 0 : index
    %4 = vector.load %arg7[%c0_7, %c0_8] : memref<1x128xf32, #tpu.memory_space<vmem>>, vector<1x128xf32>
    %cst = arith.constant 3.125000e-02 : f32
    %c0_i32 = arith.constant 0 : i32
    %c4_i32 = arith.constant 4 : i32
    %5 = arith.muli %c0_i32, %c4_i32 : i32
    %6 = tpu.assume_multiple %5, 4 : i32
    %7 = arith.index_cast %6 : i32 to index
    %c0_9 = arith.constant 0 : index
    %8 = vector.load %arg1[%7, %c0_9] : memref<4x128xf32, #tpu.memory_space<vmem>>, vector<4x128xf32>
    %9 = arith.index_cast %6 : i32 to index
    %c0_10 = arith.constant 0 : index
    %10 = vector.load %arg2[%9, %c0_10] : memref<4x128xf32, #tpu.memory_space<vmem>>, vector<4x128xf32>
    %cst_11 = arith.constant dense<0.000000e+00> : vector<4x128xf32>
    %11 = tpu.matmul %8, %0, %cst_11 {dimension_numbers = #tpu.dot_dimension_numbers<[1], [0], [0], [1], [0, 0, 1, 1], [], []>} : vector<4x128xf32>, vector<128x128xf32>, vector<4x128xf32> -> vector<4x128xf32>
    %12 = vector.broadcast %2 : vector<1x128xf32> to vector<4x128xf32>
    %13 = arith.addf %11, %12 : vector<4x128xf32>
    %14 = arith.addf %13, %10 : vector<4x128xf32>
    %cst_12 = arith.constant dense<0.000000e+00> : vector<4x128xf32>
    %15 = tpu.matmul %14, %1, %cst_12 {dimension_numbers = #tpu.dot_dimension_numbers<[1], [0], [0], [1], [0, 0, 1, 1], [], []>} : vector<4x128xf32>, vector<128x128xf32>, vector<4x128xf32> -> vector<4x128xf32>
    %16 = arith.mulf %14, %14 : vector<4x128xf32>
    %cst_13 = arith.constant dense<0.000000e+00> : vector<4x128xf32>
    %17 = tpu.matmul %16, %1, %cst_13 {dimension_numbers = #tpu.dot_dimension_numbers<[1], [0], [0], [1], [0, 0, 1, 1], [], []>} : vector<4x128xf32>, vector<128x128xf32>, vector<4x128xf32> -> vector<4x128xf32>
    %18 = vector.broadcast %cst : f32 to vector<4x128xf32>
    %19 = arith.mulf %15, %18 : vector<4x128xf32>
    %20 = vector.broadcast %cst : f32 to vector<4x128xf32>
    %21 = arith.mulf %17, %20 : vector<4x128xf32>
    %22 = arith.mulf %19, %19 : vector<4x128xf32>
    %23 = arith.subf %21, %22 : vector<4x128xf32>
    %cst_14 = arith.constant 0.000000e+00 : f32
    %24 = vector.broadcast %cst_14 : f32 to vector<4x128xf32>
    %25 = arith.maximumf %23, %24 : vector<4x128xf32>
    %cst_15 = arith.constant 9.99999996E-13 : f32
    %26 = vector.broadcast %cst_15 : f32 to vector<4x128xf32>
    %27 = arith.addf %25, %26 : vector<4x128xf32>
    %28 = math.rsqrt %27 : vector<4x128xf32>
    %29 = arith.subf %14, %19 : vector<4x128xf32>
    %30 = arith.mulf %29, %28 : vector<4x128xf32>
    %31 = vector.broadcast %3 : vector<1x128xf32> to vector<4x128xf32>
    %32 = arith.mulf %30, %31 : vector<4x128xf32>
    %33 = vector.broadcast %4 : vector<1x128xf32> to vector<4x128xf32>
    %34 = arith.addf %32, %33 : vector<4x128xf32>
    %35 = arith.index_cast %6 : i32 to index
    %c0_16 = arith.constant 0 : index
    %36 = vector.load %arg8[%35, %c0_16] : memref<4x128xf32, #tpu.memory_space<vmem>>, vector<4x128xf32>
    tpu.vector_store %arg8[%35, %c0_16], %34 {strides = array<i32>} : memref<4x128xf32, #tpu.memory_space<vmem>>, vector<4x128xf32>,
    %c1_i32 = arith.constant 1 : i32
    return
  }
  func.func @transform_0(%arg0: i32) -> (i32, i32) {
    %c0_i32 = arith.constant 0 : i32
    %c0_i32_0 = arith.constant 0 : i32
    return %arg0, %c0_i32 : i32, i32
  }
  func.func @transform_1(%arg0: i32) -> (i32, i32) {
    %c0_i32 = arith.constant 0 : i32
    %c0_i32_0 = arith.constant 0 : i32
    return %arg0, %c0_i32 : i32, i32
  }
  func.func @transform_2(%arg0: i32) -> (i32, i32) {
    %c0_i32 = arith.constant 0 : i32
    %c0_i32_0 = arith.constant 0 : i32
    %c0_i32_1 = arith.constant 0 : i32
    return %c0_i32, %c0_i32_0 : i32, i32
  }
  func.func @transform_3(%arg0: i32) -> (i32, i32) {
    %c0_i32 = arith.constant 0 : i32
    %c0_i32_0 = arith.constant 0 : i32
    %c0_i32_1 = arith.constant 0 : i32
    return %c0_i32, %c0_i32_0 : i32, i32
  }
  func.func @transform_4(%arg0: i32) -> (i32, i32) {
    %c0_i32 = arith.constant 0 : i32
    %c0_i32_0 = arith.constant 0 : i32
    %c0_i32_1 = arith.constant 0 : i32
    return %c0_i32, %c0_i32_0 : i32, i32
  }
  func.func @transform_5(%arg0: i32) -> (i32, i32) {
    %c0_i32 = arith.constant 0 : i32
    %c0_i32_0 = arith.constant 0 : i32
    %c0_i32_1 = arith.constant 0 : i32
    return %c0_i32, %c0_i32_0 : i32, i32
  }
  func.func @transform_6(%arg0: i32) -> (i32, i32) {
    %c0_i32 = arith.constant 0 : i32
    %c0_i32_0 = arith.constant 0 : i32
    %c0_i32_1 = arith.constant 0 : i32
    return %c0_i32, %c0_i32_0 : i32, i32
  }
  func.func @transform_7(%arg0: i32) -> (i32, i32) {
    %c0_i32 = arith.constant 0 : i32
    %c0_i32_0 = arith.constant 0 : i32
    return %arg0, %c0_i32 : i32, i32
  }
}

</mosaic_0001>

<llo_original>
// kernel: tpu_custom_call.1
$region0: #{tpu_custom_call.1}
  #allocation0 [shape = 'u32[]', space=smem, size = 0x4, offset = 0x4, fixed_abs, tag = 'smem constant byte address 0x4 - core index']
  #allocation1 [shape = 'u32[144,128]{1,0:T(1,128)}', space=vmem, size = 0x12000, scoped, tag = 'internal scratch']
  %s0 = inlined_call_operand.hbm [shape: f32[4,128], index: 0, kind: input, shape index: {}]
  %s1 = inlined_call_operand.hbm [shape: f32[4,128], index: 1, kind: input, shape index: {}]
  %s2 = inlined_call_operand.hbm [shape: f32[128,128], index: 2, kind: input, shape index: {}]
  %s3 = inlined_call_operand.hbm [shape: f32[128,128], index: 3, kind: input, shape index: {}]
  %s4 = inlined_call_operand.vmem [shape: f32[1,128], index: 4, kind: input, shape index: {}]
  %s5 = inlined_call_operand.vmem [shape: f32[1,128], index: 5, kind: input, shape index: {}]
  %s6 = inlined_call_operand.vmem [shape: f32[1,128], index: 6, kind: input, shape index: {}]
  %s7 = inlined_call_operand.hbm [shape: f32[4,128], index: 7, kind: output, shape index: {}]
  %s8 = sld [smem:[#allocation0]]
  $region54: #{tpu_custom_call.1} parent=0
    _
  %s10 = ssub.s32 1, %s8
  %s11 = scalar_select 0, %s10, %s8
  $region1: #{tpu_custom_call.1} parent=0
    #allocation2 [shape = 'u8[2048]{0}', space=vmem, size = 0x800, scoped, tag = 'input window, operand 0, single buffered']
    #allocation3 [shape = 's32[1]{0}', space=sflag, size = 0x4, scoped, tag = 'scoped memory for tpu_custom_call.1']
    #allocation4 [shape = 's32[1]{0}', space=sflag, size = 0x4, scoped, tag = 'scoped memory for tpu_custom_call.1']
    #allocation5 [shape = 'u8[2048]{0}', space=vmem, size = 0x800, scoped, tag = 'input window, operand 1, single buffered']
    #allocation6 [shape = 's32[1]{0}', space=sflag, size = 0x4, scoped, tag = 'scoped memory for tpu_custom_call.1']
    #allocation7 [shape = 'u8[65536]{0}', space=vmem, size = 0x10000, scoped, tag = 'input window, operand 2, single buffered']
    #allocation8 [shape = 'u8[65536]{0}', space=vmem, size = 0x10000, scoped, tag = 'input window, operand 3, single buffered']
    #allocation9 [shape = 's32[1]{0}', space=sflag, size = 0x4, scoped, tag = 'scoped memory for tpu_custom_call.1']
    #allocation10 [shape = 'u8[2048]{0}', space=vmem, size = 0x800, scoped, tag = 'output window, operand 0, single buffered']
    %12 = vsyncpa [#allocation3], 0
    %13 = vsyncpa [#allocation6], 0
    %14 = vsyncpa [#allocation9], 0
    %15 = vsyncpa [#allocation4], 0
    // Predicated region
    $region2: #{tpu_custom_call.1} parent=1 // pred_check
      _
    $region3: #{tpu_custom_call.1} parent=1 // pred_check_branch
      %17 = sbr.rel (0) target = $region5
    $region4: #{tpu_custom_call.1} parent=1 // pred_region
      %s19 = ssub.s32 64, 64
      %20 = vsyncadd [#allocation3], %s19
      %s22 = sshll.u32 [#allocation2], 4
      %s23 = int_to_ptr.vmem [resolvable:$true] %s22
      %25 = dma.hbm_to_vmem [thread:$0]  %s0, 64, %s23, [#allocation3]
    $region5: #{tpu_custom_call.1} parent=1 // pred_fallthru
      _
    // Predicated region
    $region6: #{tpu_custom_call.1} parent=1 // pred_check
      _
    $region7: #{tpu_custom_call.1} parent=1 // pred_check_branch
      %27 = sbr.rel (0) target = $region9
    $region8: #{tpu_custom_call.1} parent=1 // pred_region
      %s29 = ssub.s32 64, 64
      %30 = vsyncadd [#allocation6], %s29
      %s32 = sshll.u32 [#allocation5], 4
      %s33 = int_to_ptr.vmem [resolvable:$true] %s32
      %35 = dma.hbm_to_vmem [thread:$0]  %s1, 64, %s33, [#allocation6]
    $region9: #{tpu_custom_call.1} parent=1 // pred_fallthru
      _
    // Predicated region
    $region10: #{tpu_custom_call.1} parent=1 // pred_check
      _
    $region11: #{tpu_custom_call.1} parent=1 // pred_check_branch
      %37 = sbr.rel (0) target = $region13
    $region12: #{tpu_custom_call.1} parent=1 // pred_region
      %s39 = ssub.s32 2048, 2048
      %40 = vsyncadd [#allocation6], %s39
      %s41 = sshll.u32 [#allocation7], 4
      %s42 = int_to_ptr.vmem [resolvable:$true] %s41
      %47 = dma.hbm_to_vmem [thread:$0]  %s2, 2048, %s42, [#allocation6], 128, 128, 8
    $region13: #{tpu_custom_call.1} parent=1 // pred_fallthru
      _
    // Predicated region
    $region14: #{tpu_custom_call.1} parent=1 // pred_check
      _
    $region15: #{tpu_custom_call.1} parent=1 // pred_check_branch
      %49 = sbr.rel (0) target = $region17
    $region16: #{tpu_custom_call.1} parent=1 // pred_region
      %s51 = ssub.s32 2048, 2048
      %52 = vsyncadd [#allocation9], %s51
      %s53 = sshll.u32 [#allocation8], 4
      %s54 = int_to_ptr.vmem [resolvable:$true] %s53
      %59 = dma.hbm_to_vmem [thread:$0]  %s3, 2048, %s54, [#allocation9], 128, 128, 8
    $region17: #{tpu_custom_call.1} parent=1 // pred_fallthru
      _
    // Predicated region
    $region18: #{tpu_custom_call.1} parent=1 // pred_check
      _
    $region19: #{tpu_custom_call.1} parent=1 // pred_check_branch
      %61 = sbr.rel (0) target = $region21
    $region20: #{tpu_custom_call.1} parent=1 // pred_region
      _
    $region21: #{tpu_custom_call.1} parent=1 // pred_fallthru
      _
    // Predicated region
    $region22: #{tpu_custom_call.1} parent=1 // pred_check
      _
    $region23: #{tpu_custom_call.1} parent=1 // pred_check_branch
      %63 = sbr.rel (0) target = $region25
    $region24: #{tpu_custom_call.1} parent=1 // pred_region
      _
    $region25: #{tpu_custom_call.1} parent=1 // pred_fallthru
      _
    // Predicated region
    $region26: #{tpu_custom_call.1} parent=1 // pred_check
      _
    $region27: #{tpu_custom_call.1} parent=1 // pred_check_branch
      %65 = sbr.rel (0) target = $region29
    $region28: #{tpu_custom_call.1} parent=1 // pred_region
      _
    $region29: #{tpu_custom_call.1} parent=1 // pred_fallthru
      _
    // Predicated region
    $region30: #{tpu_custom_call.1} parent=1 // pred_check
      _
    $region31: #{tpu_custom_call.1} parent=1 // pred_check_branch
      %67 = sbr.rel (0) target = $region33
    $region32: #{tpu_custom_call.1} parent=1 // pred_region
      %68 = dma.done [#allocation3], 64
    $region33: #{tpu_custom_call.1} parent=1 // pred_fallthru
      _
    // Predicated region
    $region34: #{tpu_custom_call.1} parent=1 // pred_check
      _
    $region35: #{tpu_custom_call.1} parent=1 // pred_check_branch
      %70 = sbr.rel (0) target = $region37
    $region36: #{tpu_custom_call.1} parent=1 // pred_region
      %71 = dma.done [#allocation6], 64
    $region37: #{tpu_custom_call.1} parent=1 // pred_fallthru
      _
    // Predicated region
    $region38: #{tpu_custom_call.1} parent=1 // pred_check
      _
    $region39: #{tpu_custom_call.1} parent=1 // pred_check_branch
      %73 = sbr.rel (0) target = $region41
    $region40: #{tpu_custom_call.1} parent=1 // pred_region
      %74 = dma.done [#allocation6], 2048
    $region41: #{tpu_custom_call.1} parent=1 // pred_fallthru
      _
    // Predicated region
    $region42: #{tpu_custom_call.1} parent=1 // pred_check
      _
    $region43: #{tpu_custom_call.1} parent=1 // pred_check_branch
      %76 = sbr.rel (0) target = $region45
    $region44: #{tpu_custom_call.1} parent=1 // pred_region
      %77 = dma.done [#allocation9], 2048
    $region45: #{tpu_custom_call.1} parent=1 // pred_fallthru
      _
    %v78 = vld [vmem:[#allocation7] sm:$0xff]
    %v79 = vld [vmem:[#allocation7 + $0x8] sm:$0xff]
    %v80 = vld [vmem:[#allocation7 + $0x10] sm:$0xff]
    %v81 = vld [vmem:[#allocation7 + $0x18] sm:$0xff]
    %v82 = vld [vmem:[#allocation7 + $0x20] sm:$0xff]
    %v83 = vld [vmem:[#allocation7 + $0x28] sm:$0xff]
    %v84 = vld [vmem:[#allocation7 + $0x30] sm:$0xff]
    %v85 = vld [vmem:[#allocation7 + $0x38] sm:$0xff]
    %v86 = vld [vmem:[#allocation7 + $0x40] sm:$0xff]
    %v87 = vld [vmem:[#allocation7 + $0x48] sm:$0xff]
    %v88 = vld [vmem:[#allocation7 + $0x50] sm:$0xff]
    %v89 = vld [vmem:[#allocation7 + $0x58] sm:$0xff]
    %v90 = vld [vmem:[#allocation7 + $0x60] sm:$0xff]
    %v91 = vld [vmem:[#allocation7 + $0x68] sm:$0xff]
    %v92 = vld [vmem:[#allocation7 + $0x70] sm:$0xff]
    %v93 = vld [vmem:[#allocation7 + $0x78] sm:$0xff]
    %v94 = vld [vmem:[#allocation8] sm:$0xff]
    %v95 = vld [vmem:[#allocation8 + $0x8] sm:$0xff]
    %v96 = vld [vmem:[#allocation8 + $0x10] sm:$0xff]
    %v97 = vld [vmem:[#allocation8 + $0x18] sm:$0xff]
    %v98 = vld [vmem:[#allocation8 + $0x20] sm:$0xff]
    %v99 = vld [vmem:[#allocation8 + $0x28] sm:$0xff]
    %v100 = vld [vmem:[#allocation8 + $0x30] sm:$0xff]
    %v101 = vld [vmem:[#allocation8 + $0x38] sm:$0xff]
    %v102 = vld [vmem:[#allocation8 + $0x40] sm:$0xff]
    %v103 = vld [vmem:[#allocation8 + $0x48] sm:$0xff]
    %v104 = vld [vmem:[#allocation8 + $0x50] sm:$0xff]
    %v105 = vld [vmem:[#allocation8 + $0x58] sm:$0xff]
    %v106 = vld [vmem:[#allocation8 + $0x60] sm:$0xff]
    %v107 = vld [vmem:[#allocation8 + $0x68] sm:$0xff]
    %v108 = vld [vmem:[#allocation8 + $0x70] sm:$0xff]
    %v109 = vld [vmem:[#allocation8 + $0x78] sm:$0xff]
    %v110 = vld [vmem:[%s4] sm:$0x1]
    %v111 = vld [vmem:[%s5] sm:$0x1]
    %v112 = vld [vmem:[%s6] sm:$0x1]
    %v113 = vld [vmem:[#allocation2] sm:$0xf]
    %v114 = vld [vmem:[#allocation5] sm:$0xf]
    %v116 = vlaneseq
    %v117 = vshrl.u32 %v116, 7
    %v118 = vsub.s32 0, %v117
    %v119 = vrot.slane %v110, %v118
    %121 = vmatprep.subr.mxu0 0.0
    %122 = vmatpush1.msra.mxu0 %v78
    %123 = vmatprep.subr.mxu0 0.0
    %124 = vmatpush1.msra.mxu0 %v79
    %125 = vmatprep.subr.mxu0 0.0
    %126 = vmatpush1.msra.mxu0 %v80
    %127 = vmatprep.subr.mxu0 0.0
    %128 = vmatpush1.msra.mxu0 %v81
    %129 = vmatprep.subr.mxu0 0.0
    %130 = vmatpush1.msra.mxu0 %v82
    %131 = vmatprep.subr.mxu0 0.0
    %132 = vmatpush1.msra.mxu0 %v83
    %133 = vmatprep.subr.mxu0 0.0
    %134 = vmatpush1.msra.mxu0 %v84
    %135 = vmatprep.subr.mxu0 0.0
    %136 = vmatpush1.msra.mxu0 %v85
    %137 = vmatprep.subr.mxu0 0.0
    %138 = vmatpush1.msra.mxu0 %v86
    %139 = vmatprep.subr.mxu0 0.0
    %140 = vmatpush1.msra.mxu0 %v87
    %141 = vmatprep.subr.mxu0 0.0
    %142 = vmatpush1.msra.mxu0 %v88
    %143 = vmatprep.subr.mxu0 0.0
    %144 = vmatpush1.msra.mxu0 %v89
    %145 = vmatprep.subr.mxu0 0.0
    %146 = vmatpush1.msra.mxu0 %v90
    %147 = vmatprep.subr.mxu0 0.0
    %148 = vmatpush1.msra.mxu0 %v91
    %149 = vmatprep.subr.mxu0 0.0
    %150 = vmatpush1.msra.mxu0 %v92
    %151 = vmatprep.subr.mxu0 0.0
    %152 = vmatpush1.msra.mxu0 %v93
    %153 = vmatprep.subr.mxu0 0.0
    %154 = vmatpush1.msra.mxu0 0.0
    %155 = vmatprep.subr.mxu0 0.0
    %156 = vmatpush1.msra.mxu0 0.0
    %157 = vmatprep.subr.mxu0 0.0
    %158 = vmatpush1.msra.mxu0 0.0
    %159 = vmatprep.subr.mxu0 0.0
    %160 = vmatpush1.msra.mxu0 0.0
    %161 = vmatprep.subr.mxu0 0.0
    %162 = vmatpush1.msra.mxu0 0.0
    %163 = vmatprep.subr.mxu0 0.0
    %164 = vmatpush1.msra.mxu0 0.0
    %165 = vmatprep.subr.mxu0 0.0
    %166 = vmatpush1.msra.mxu0 0.0
    %167 = vmatprep.subr.mxu0 0.0
    %168 = vmatpush1.msra.mxu0 0.0
    %169 = vmatprep.subr.mxu0 0.0
    %170 = vmatpush1.msra.mxu0 0.0
    %171 = vmatprep.subr.mxu0 0.0
    %172 = vmatpush1.msra.mxu0 0.0
    %173 = vmatprep.subr.mxu0 0.0
    %174 = vmatpush1.msra.mxu0 0.0
    %175 = vmatprep.subr.mxu0 0.0
    %176 = vmatpush1.msra.mxu0 0.0
    %177 = vmatprep.subr.mxu0 0.0
    %178 = vmatpush1.msra.mxu0 0.0
    %179 = vmatprep.subr.mxu0 0.0
    %180 = vmatpush1.msra.mxu0 0.0
    %181 = vmatprep.subr.mxu0 0.0
    %182 = vmatpush1.msra.mxu0 0.0
    %183 = vmatprep.subr.mxu0 0.0
    %184 = vmatpush1.msra.mxu0 0.0
    %185 = vmatprep.mubr.f32.mxu0 0.0
    %186 = vmatmul.mubr.f32.gmra.mrb[0].mxu0 %v113
    %v187 = vpop.f32.mrb[0].mxu0
    %v188 = vadd.f32 %v119, %v187
    %v189 = vpop.f32.mrb[0].mxu0
    %190 = vdwg.mxu0
    %v191 = vadd.f32 %v188, %v114
    %192 = vmatprep.subr.mxu0 0.0
    %193 = vmatpush1.msra.mxu0 %v94
    %194 = vmatprep.subr.mxu0 0.0
    %195 = vmatpush1.msra.mxu0 %v95
    %196 = vmatprep.subr.mxu0 0.0
    %197 = vmatpush1.msra.mxu0 %v96
    %198 = vmatprep.subr.mxu0 0.0
    %199 = vmatpush1.msra.mxu0 %v97
    %200 = vmatprep.subr.mxu0 0.0
    %201 = vmatpush1.msra.mxu0 %v98
    %202 = vmatprep.subr.mxu0 0.0
    %203 = vmatpush1.msra.mxu0 %v99
    %204 = vmatprep.subr.mxu0 0.0
    %205 = vmatpush1.msra.mxu0 %v100
    %206 = vmatprep.subr.mxu0 0.0
    %207 = vmatpush1.msra.mxu0 %v101
    %208 = vmatprep.subr.mxu0 0.0
    %209 = vmatpush1.msra.mxu0 %v102
    %210 = vmatprep.subr.mxu0 0.0
    %211 = vmatpush1.msra.mxu0 %v103
    %212 = vmatprep.subr.mxu0 0.0
    %213 = vmatpush1.msra.mxu0 %v104
    %214 = vmatprep.subr.mxu0 0.0
    %215 = vmatpush1.msra.mxu0 %v105
    %216 = vmatprep.subr.mxu0 0.0
    %217 = vmatpush1.msra.mxu0 %v106
    %218 = vmatprep.subr.mxu0 0.0
    %219 = vmatpush1.msra.mxu0 %v107
    %220 = vmatprep.subr.mxu0 0.0
    %221 = vmatpush1.msra.mxu0 %v108
    %222 = vmatprep.subr.mxu0 0.0
    %223 = vmatpush1.msra.mxu0 %v109
    %224 = vmatprep.subr.mxu0 0.0
    %225 = vmatpush1.msra.mxu0 0.0
    %226 = vmatprep.subr.mxu0 0.0
    %227 = vmatpush1.msra.mxu0 0.0
    %228 = vmatprep.subr.mxu0 0.0
    %229 = vmatpush1.msra.mxu0 0.0
    %230 = vmatprep.subr.mxu0 0.0
    %231 = vmatpush1.msra.mxu0 0.0
    %232 = vmatprep.subr.mxu0 0.0
    %233 = vmatpush1.msra.mxu0 0.0
    %234 = vmatprep.subr.mxu0 0.0
    %235 = vmatpush1.msra.mxu0 0.0
    %236 = vmatprep.subr.mxu0 0.0
    %237 = vmatpush1.msra.mxu0 0.0
    %238 = vmatprep.subr.mxu0 0.0
    %239 = vmatpush1.msra.mxu0 0.0
    %240 = vmatprep.subr.mxu0 0.0
    %241 = vmatpush1.msra.mxu0 0.0
    %242 = vmatprep.subr.mxu0 0.0
    %243 = vmatpush1.msra.mxu0 0.0
    %244 = vmatprep.subr.mxu0 0.0
    %245 = vmatpush1.msra.mxu0 0.0
    %246 = vmatprep.subr.mxu0 0.0
    %247 = vmatpush1.msra.mxu0 0.0
    %248 = vmatprep.subr.mxu0 0.0
    %249 = vmatpush1.msra.mxu0 0.0
    %250 = vmatprep.subr.mxu0 0.0
    %251 = vmatpush1.msra.mxu0 0.0
    %252 = vmatprep.subr.mxu0 0.0
    %253 = vmatpush1.msra.mxu0 0.0
    %254 = vmatprep.subr.mxu0 0.0
    %255 = vmatpush1.msra.mxu0 0.0
    %256 = vmatprep.mubr.f32.mxu0 0.0
    %257 = vmatmul.mubr.f32.gmra.mrb[0].mxu0 %v191
    %v258 = vpop.f32.mrb[0].mxu0
    %v259 = vadd.f32 0.0, %v258
    %v260 = vpop.f32.mrb[0].mxu0
    %261 = vdwg.mxu0
    %v262 = vmul.f32 %v191, %v191
    %263 = vmatprep.subr.mxu0 0.0
    %264 = vmatpush1.msra.mxu0 %v94
    %265 = vmatprep.subr.mxu0 0.0
    %266 = vmatpush1.msra.mxu0 %v95
    %267 = vmatprep.subr.mxu0 0.0
    %268 = vmatpush1.msra.mxu0 %v96
    %269 = vmatprep.subr.mxu0 0.0
    %270 = vmatpush1.msra.mxu0 %v97
    %271 = vmatprep.subr.mxu0 0.0
    %272 = vmatpush1.msra.mxu0 %v98
    %273 = vmatprep.subr.mxu0 0.0
    %274 = vmatpush1.msra.mxu0 %v99
    %275 = vmatprep.subr.mxu0 0.0
    %276 = vmatpush1.msra.mxu0 %v100
    %277 = vmatprep.subr.mxu0 0.0
    %278 = vmatpush1.msra.mxu0 %v101
    %279 = vmatprep.subr.mxu0 0.0
    %280 = vmatpush1.msra.mxu0 %v102
    %281 = vmatprep.subr.mxu0 0.0
    %282 = vmatpush1.msra.mxu0 %v103
    %283 = vmatprep.subr.mxu0 0.0
    %284 = vmatpush1.msra.mxu0 %v104
    %285 = vmatprep.subr.mxu0 0.0
    %286 = vmatpush1.msra.mxu0 %v105
    %287 = vmatprep.subr.mxu0 0.0
    %288 = vmatpush1.msra.mxu0 %v106
    %289 = vmatprep.subr.mxu0 0.0
    %290 = vmatpush1.msra.mxu0 %v107
    %291 = vmatprep.subr.mxu0 0.0
    %292 = vmatpush1.msra.mxu0 %v108
    %293 = vmatprep.subr.mxu0 0.0
    %294 = vmatpush1.msra.mxu0 %v109
    %295 = vmatprep.subr.mxu0 0.0
    %296 = vmatpush1.msra.mxu0 0.0
    %297 = vmatprep.subr.mxu0 0.0
    %298 = vmatpush1.msra.mxu0 0.0
    %299 = vmatprep.subr.mxu0 0.0
    %300 = vmatpush1.msra.mxu0 0.0
    %301 = vmatprep.subr.mxu0 0.0
    %302 = vmatpush1.msra.mxu0 0.0
    %303 = vmatprep.subr.mxu0 0.0
    %304 = vmatpush1.msra.mxu0 0.0
    %305 = vmatprep.subr.mxu0 0.0
    %306 = vmatpush1.msra.mxu0 0.0
    %307 = vmatprep.subr.mxu0 0.0
    %308 = vmatpush1.msra.mxu0 0.0
    %309 = vmatprep.subr.mxu0 0.0
    %310 = vmatpush1.msra.mxu0 0.0
    %311 = vmatprep.subr.mxu0 0.0
    %312 = vmatpush1.msra.mxu0 0.0
    %313 = vmatprep.subr.mxu0 0.0
    %314 = vmatpush1.msra.mxu0 0.0
    %315 = vmatprep.subr.mxu0 0.0
    %316 = vmatpush1.msra.mxu0 0.0
    %317 = vmatprep.subr.mxu0 0.0
    %318 = vmatpush1.msra.mxu0 0.0
    %319 = vmatprep.subr.mxu0 0.0
    %320 = vmatpush1.msra.mxu0 0.0
    %321 = vmatprep.subr.mxu0 0.0
    %322 = vmatpush1.msra.mxu0 0.0
    %323 = vmatprep.subr.mxu0 0.0
    %324 = vmatpush1.msra.mxu0 0.0
    %325 = vmatprep.subr.mxu0 0.0
    %326 = vmatpush1.msra.mxu0 0.0
    %327 = vmatprep.mubr.f32.mxu0 0.0
    %328 = vmatmul.mubr.f32.gmra.mrb[0].mxu0 %v262
    %v329 = vpop.f32.mrb[0].mxu0
    %v330 = vadd.f32 0.0, %v329
    %v331 = vpop.f32.mrb[0].mxu0
    %332 = vdwg.mxu0
    %v333 = vmul.f32 %v259, 0.03125
    %v334 = vmul.f32 %v330, 0.03125
    %v335 = vmul.f32 %v333, %v333
    %v336 = vsub.f32 %v334, %v335
    %v337 = vmax.f32 %v336, 0.0
    %v338 = vadd.f32 %v337, 1e-12
    %v339 = vrsqrt.pop %v338
    %v340 = vsub.f32 %v191, %v333
    %v341 = vmul.f32 %v340, %v339
    %v343 = vlaneseq
    %v344 = vshrl.u32 %v343, 7
    %v345 = vsub.s32 0, %v344
    %v346 = vrot.slane %v111, %v345
    %v348 = vmul.f32 %v341, %v346
    %v350 = vlaneseq
    %v351 = vshrl.u32 %v350, 7
    %v352 = vsub.s32 0, %v351
    %v353 = vrot.slane %v112, %v352
    %v355 = vadd.f32 %v348, %v353
    %356 = vst [vmem:[#allocation10] sm:$0xf] %v355
    // Predicated region
    $region46: #{tpu_custom_call.1} parent=1 // pred_check
      _
    $region47: #{tpu_custom_call.1} parent=1 // pred_check_branch
      %358 = sbr.rel (0) target = $region49
    $region48: #{tpu_custom_call.1} parent=1 // pred_region
      %s360 = ssub.s32 64, 64
      %361 = vsyncadd [#allocation4], %s360
      %s363 = sshll.u32 [#allocation10], 4
      %s364 = int_to_ptr.vmem [resolvable:$true] %s363
      %366 = dma.vmem_to_hbm [thread:$0]  %s364, 64, %s7, [#allocation4]
    $region49: #{tpu_custom_call.1} parent=1 // pred_fallthru
      _
    // Predicated region
    $region50: #{tpu_custom_call.1} parent=1 // pred_check
      _
    $region51: #{tpu_custom_call.1} parent=1 // pred_check_branch
      %368 = sbr.rel (0) target = $region53
    $region52: #{tpu_custom_call.1} parent=1 // pred_region
      %369 = dma.done [#allocation4], 64
    $region53: #{tpu_custom_call.1} parent=1 // pred_fallthru
      _
    %370 = vsyncpa [#allocation3], 1
    %371 = vsyncpa [#allocation6], 1
    %372 = vsyncpa [#allocation9], 1
    %373 = vsyncpa [#allocation4], 1

</llo_original>
